<compile_context>
chip_gen: v5e
topology: v5e:2x2
jax: 0.10.0
libtpu: 0.0.40
codegen_flags: <defaults>
</compile_context>

<pallas_src>
import functools
import math

import jax
import jax.numpy as jnp
from jax.experimental import pallas as pl
from jax.experimental.pallas import tpu as pltpu


def _round_up(a: int, b: int) -> int:
    return ((a + b - 1) // b) * b


def _cdiv(a: int, b: int) -> int:
    return -(-a // b)


def _normalized_linear_kernel(x_ref, w_ref, xinv_ref, winv_ref, o_ref, acc_ref,
                              *, tk: int, k_rem: int):
    # x_ref:    (tm, tk) rows of the flattened input (original dtype)
    # w_ref:    (tn, tk) rows of the weight matrix   (original dtype)
    # xinv_ref: (tm, 1)  precomputed 1 / max(||x_row||, eps), f32
    # winv_ref: (1, tn)  precomputed 1 / max(||w_row||, eps), f32
    # o_ref:    (tm, tn) cosine-similarity logits, f32
    # acc_ref:  (tm, tn) f32 accumulator scratch (persists across the K axis)
    kk = pl.program_id(2)

    @pl.when(kk == 0)
    def _():
        acc_ref[...] = jnp.zeros_like(acc_ref)

    x = x_ref[...].astype(jnp.float32)   # matches torch's x.float(); free for f32
    w = w_ref[...].astype(jnp.float32)

    if k_rem:
        # K was split into tk-chunks and the last chunk is ragged: zero the
        # out-of-range tail so garbage never enters the accumulator.
        lim = jnp.where(kk == pl.num_programs(2) - 1,
                        jnp.int32(k_rem), jnp.int32(tk))
        col = jax.lax.broadcasted_iota(jnp.int32, (1, tk), 1)
        keep = col < lim
        x = jnp.where(keep, x, 0.0)
        w = jnp.where(keep, w, 0.0)

    # (tm, tk) . (tn, tk)^T -> (tm, tn) on the MXU, f32 accumulation.
    acc_ref[...] += jax.lax.dot_general(
        x, w, (((1,), (1,)), ((), ())),
        preferred_element_type=jnp.float32)

    @pl.when(kk == pl.num_programs(2) - 1)
    def _():
        # Apply the hoisted normalization as two broadcast multiplies.
        o_ref[...] = acc_ref[...] * xinv_ref[...] * winv_ref[...]


@functools.partial(jax.jit,
                   static_argnames=("eps", "block_m", "block_n", "block_k"))
def normalized_linear(x, weight, *, eps: float = 1e-12,
                      block_m: int = 512, block_n: int = 256,
                      block_k: int = 2048):
    """Forward of NormalizedLinear: normalize(x, -1) @ normalize(w, 1).T.

    `x` may have any number of leading dims; the last dim is in_channels.
    `weight` is (out_channels, in_channels).  Output is float32 (torch's
    `x.float()` under autocast(False)).
    """
    orig_shape = x.shape
    k = orig_shape[-1]
    m = 1
    for d in orig_shape[:-1]:
        m *= d
    n, k_w = weight.shape
    assert k_w == k, f"in_channels mismatch: x has {k}, weight has {k_w}"

    # Keep inputs in their original dtype (per-tile cast inside the kernel);
    # only the tiny norm vectors are materialized in f32.
    x2d = x.reshape(m, k)

    # Tiny pre-pass: reciprocal row norms (fuses under jit; O(M+N) f32 output).
    x_ss = jnp.sum(jnp.square(x2d.astype(jnp.float32)), axis=-1, keepdims=True)
    w_ss = jnp.sum(jnp.square(weight.astype(jnp.float32)), axis=-1)
    x_inv = 1.0 / jnp.maximum(jnp.sqrt(x_ss), eps)              # (m, 1)
    w_inv = (1.0 / jnp.maximum(jnp.sqrt(w_ss), eps))[None, :]   # (1, n)

    # --- generation-aware VMEM budget -------------------------------------
    try:
        vmem_cap = int(pltpu.get_tpu_info().vmem_capacity_bytes)
    except Exception:
        vmem_cap = 64 * 1024 * 1024                 # conservative: v7x per-TC
    vmem_limit = min((vmem_cap * 3) // 4, 100 * 1024 * 1024)
    budget = (vmem_limit * 4) // 5                  # headroom for Mosaic scratch

    # --- tile sizes ---------------------------------------------------------
    block_m = max(8, _round_up(block_m, 8))
    block_n = max(128, _round_up(block_n, 128))
    block_k = max(128, _round_up(block_k, 128))
    xb = x.dtype.itemsize
    wb = weight.dtype.itemsize

    tm = m if m <= block_m else block_m             # full dim or 8-aligned tile
    tn = n if n <= block_n else block_n             # full dim or 128-aligned tile

    def fits(tm_, tn_, tk_):
        working = (2 * tk_ * (tm_ * xb + tn_ * wb)  # double-buffered x / w tiles
                   + 2 * 4 * (tm_ + tn_)            # double-buffered inv-norm tiles
                   + 2 * 4 * tm_ * tn_              # double-buffered output tile
                   + 4 * tm_ * tn_)                 # f32 accumulator scratch
        return working <= budget

    if fits(tm, tn, k):
        tk = k                                      # keep K whole: one reduction step
    else:
        tk = min(block_k, _round_up(k, 128))
        while tk > 128 and not fits(tm, tn, tk):
            tk = max(128, _round_up(tk // 2, 128))
        while tm > 256 and not fits(tm, tn, tk):
            tm = max(256, _round_up(tm // 2, 8))
        # TODO(synk): also shrink tn if an exotic config still overflows VMEM.

    k_rem = (k % tk) if tk < k else 0
    ni, nj, nk = _cdiv(m, tm), _cdiv(n, tn), _cdiv(k, tk)

    # --- pick which operand stays resident across the inner grid axis ------
    traffic_x_res = m * k + n * k * ni              # x resident, weight re-streamed
    traffic_w_res = n * k + m * k * nj              # weight resident, x re-streamed
    w_resident = traffic_w_res < traffic_x_res

    if w_resident:
        grid = (nj, ni, nk)
        x_map = lambda j, i, kb: (i, kb)
        w_map = lambda j, i, kb: (j, kb)
        xin_map = lambda j, i, kb: (i, 0)
        win_map = lambda j, i, kb: (0, j)
        out_map = lambda j, i, kb: (i, j)
    else:
        grid = (ni, nj, nk)
        x_map = lambda i, j, kb: (i, kb)
        w_map = lambda i, j, kb: (j, kb)
        xin_map = lambda i, j, kb: (i, 0)
        win_map = lambda i, j, kb: (0, j)
        out_map = lambda i, j, kb: (i, j)

    out = pl.pallas_call(
        functools.partial(_normalized_linear_kernel, tk=tk, k_rem=k_rem),
        out_shape=jax.ShapeDtypeStruct((m, n), jnp.float32),
        grid_spec=pltpu.PrefetchScalarGridSpec(
            num_scalar_prefetch=0,
            grid=grid,
            in_specs=[
                pl.BlockSpec((tm, tk), x_map),
                pl.BlockSpec((tn, tk), w_map),
                pl.BlockSpec((tm, 1), xin_map),
                pl.BlockSpec((1, tn), win_map),
            ],
            out_specs=pl.BlockSpec((tm, tn), out_map),
            scratch_shapes=[pltpu.VMEM((tm, tn), jnp.float32)],
        ),
        compiler_params=pltpu.CompilerParams(
            dimension_semantics=("parallel", "parallel", "arbitrary"),
            vmem_limit_bytes=int(vmem_limit),
        ),
    )(x2d, weight, x_inv, w_inv)

    return out.reshape(orig_shape[:-1] + (n,))


class NormalizedLinear:
    """JAX/Pallas equivalent of the PyTorch NormalizedLinear module."""

    def __init__(self, in_channels, out_channels, eps=1e-05, *, key=None):
        if key is None:
            key = jax.random.PRNGKey(0)
        # xavier_uniform_: U(-a, a) with a = sqrt(6 / (fan_in + fan_out)).
        limit = math.sqrt(6.0 / (in_channels + out_channels))
        self.weight = jax.random.uniform(
            key, (out_channels, in_channels), jnp.float32, -limit, limit)
        # Kept for API parity; the torch forward uses F.normalize's default
        # eps (1e-12), not self.eps, so the kernel does too.
        self.eps = eps

    def __call__(self, x):
        return normalized_linear(x, self.weight)

    def normalize_weight(self):
        norm = jnp.linalg.norm(self.weight, axis=1, keepdims=True)
        return self.weight / jnp.maximum(norm, 1e-12)


if __name__ == "__main__":
    key = jax.random.PRNGKey(0)
    kx, kw = jax.random.split(key)

    in_channels, out_channels = 32, 16
    x = jax.random.normal(kx, (2, 8, in_channels), dtype=jnp.float32)

    module = NormalizedLinear(in_channels, out_channels, key=kw)
    out = jax.block_until_ready(module(x))
    assert out.shape == (2, 8, out_channels), out.shape
    assert out.dtype == jnp.float32, out.dtype

    # Pure-JAX reference of the torch forward.
    xn = x / jnp.maximum(jnp.linalg.norm(x, axis=-1, keepdims=True), 1e-12)
    wn = module.weight / jnp.maximum(
        jnp.linalg.norm(module.weight, axis=-1, keepdims=True), 1e-12)
    ref = jnp.einsum("bsk,nk->bsn", xn, wn)
    assert jnp.allclose(out, ref, rtol=1e-5, atol=1e-5), "mismatch vs reference"

    # Outputs are cosine similarities -> bounded by 1 in magnitude.
    assert bool(jnp.all(jnp.abs(out) <= 1.0 + 1e-5))

    print("KERNEL_OK")
</pallas_src>

<mosaic_0001>
module attributes {stable_mosaic.version = 11 : i64} {
  func.func @_normalized_linear_kernel(%arg0: i32, %arg1: i32, %arg2: i32, %arg3: memref<16x32xf32, #tpu.memory_space<vmem>>, %arg4: memref<16x32xf32, #tpu.memory_space<vmem>>, %arg5: memref<16x1xf32, #tpu.memory_space<vmem>>, %arg6: memref<1x16xf32, #tpu.memory_space<vmem>>, %arg7: memref<16x16xf32, #tpu.memory_space<vmem>>, %arg8: memref<16x16xf32, #tpu.memory_space<vmem>>) attributes {dimension_semantics = [#tpu.dimension_semantics<parallel>, #tpu.dimension_semantics<parallel>, #tpu.dimension_semantics<arbitrary>], iteration_bounds = array<i64: 1, 1, 1>, scalar_prefetch = 0 : i64, scratch_operands = 1 : i64, tpu.core_type = #tpu.core_type<tc>, window_params = [{transform_indices = @transform_0, window_bounds = array<i64: 16, 32>}, {transform_indices = @transform_1, window_bounds = array<i64: 16, 32>}, {transform_indices = @transform_2, window_bounds = array<i64: 16, 1>}, {transform_indices = @transform_3, window_bounds = array<i64: 1, 16>}, {transform_indices = @transform_4, window_bounds = array<i64: 16, 16>}]} {
    %c0_i32 = arith.constant 0 : i32
    %0 = arith.cmpi eq, %arg2, %c0_i32 : i32
    %1 = arith.extui %0 : i1 to i32
    %c0_i32_0 = arith.constant 0 : i32
    %2 = arith.cmpi ne, %1, %c0_i32_0 : i32
    scf.if %2 {
      %cst_10 = arith.constant 0.000000e+00 : f32
      %12 = vector.broadcast %cst_10 : f32 to vector<16x16xf32>
      %c0_11 = arith.constant 0 : index
      %c0_12 = arith.constant 0 : index
      %13 = vector.load %arg8[%c0_11, %c0_12] : memref<16x16xf32, #tpu.memory_space<vmem>>, vector<16x16xf32>
      tpu.vector_store %arg8[%c0_11, %c0_12], %12 {strides = array<i32>} : memref<16x16xf32, #tpu.memory_space<vmem>>, vector<16x16xf32>,
    } else {
    }
    %c0 = arith.constant 0 : index
    %c0_1 = arith.constant 0 : index
    %3 = vector.load %arg3[%c0, %c0_1] : memref<16x32xf32, #tpu.memory_space<vmem>>, vector<16x32xf32>
    %c0_2 = arith.constant 0 : index
    %c0_3 = arith.constant 0 : index
    %4 = vector.load %arg4[%c0_2, %c0_3] : memref<16x32xf32, #tpu.memory_space<vmem>>, vector<16x32xf32>
    %c0_4 = arith.constant 0 : index
    %c0_5 = arith.constant 0 : index
    %5 = vector.load %arg8[%c0_4, %c0_5] : memref<16x16xf32, #tpu.memory_space<vmem>>, vector<16x16xf32>
    %cst = arith.constant dense<0.000000e+00> : vector<16x16xf32>
    %6 = tpu.matmul %3, %4, %cst {dimension_numbers = #tpu.dot_dimension_numbers<[1], [1], [0], [0], [0, 0, 1, 0], [], []>} : vector<16x32xf32>, vector<16x32xf32>, vector<16x16xf32> -> vector<16x16xf32>
    %7 = arith.addf %5, %6 : vector<16x16xf32>
    %c0_6 = arith.constant 0 : index
    %c0_7 = arith.constant 0 : index
    %8 = vector.load %arg8[%c0_6, %c0_7] : memref<16x16xf32, #tpu.memory_space<vmem>>, vector<16x16xf32>
    tpu.vector_store %arg8[%c0_6, %c0_7], %7 {strides = array<i32>} : memref<16x16xf32, #tpu.memory_space<vmem>>, vector<16x16xf32>,
    %c0_i32_8 = arith.constant 0 : i32
    %9 = arith.cmpi eq, %arg2, %c0_i32_8 : i32
    %10 = arith.extui %9 : i1 to i32
    %c0_i32_9 = arith.constant 0 : i32
    %11 = arith.cmpi ne, %10, %c0_i32_9 : i32
    scf.if %11 {
      %c0_10 = arith.constant 0 : index
      %c0_11 = arith.constant 0 : index
      %12 = vector.load %arg8[%c0_10, %c0_11] : memref<16x16xf32, #tpu.memory_space<vmem>>, vector<16x16xf32>
      %c0_12 = arith.constant 0 : index
      %c0_13 = arith.constant 0 : index
      %13 = vector.load %arg5[%c0_12, %c0_13] : memref<16x1xf32, #tpu.memory_space<vmem>>, vector<16x1xf32>
      %14 = vector.broadcast %13 : vector<16x1xf32> to vector<16x16xf32>
      %15 = arith.mulf %12, %14 : vector<16x16xf32>
      %c0_14 = arith.constant 0 : index
      %c0_15 = arith.constant 0 : index
      %16 = vector.load %arg6[%c0_14, %c0_15] : memref<1x16xf32, #tpu.memory_space<vmem>>, vector<1x16xf32>
      %17 = vector.broadcast %16 : vector<1x16xf32> to vector<16x16xf32>
      %18 = arith.mulf %15, %17 : vector<16x16xf32>
      %c0_16 = arith.constant 0 : index
      %c0_17 = arith.constant 0 : index
      %19 = vector.load %arg7[%c0_16, %c0_17] : memref<16x16xf32, #tpu.memory_space<vmem>>, vector<16x16xf32>
      tpu.vector_store %arg7[%c0_16, %c0_17], %18 {strides = array<i32>} : memref<16x16xf32, #tpu.memory_space<vmem>>, vector<16x16xf32>,
    } else {
    }
    return
  }
  func.func @transform_0(%arg0: i32, %arg1: i32, %arg2: i32) -> (i32, i32) {
    %c0_i32 = arith.constant 0 : i32
    return %arg0, %arg2 : i32, i32
  }
  func.func @transform_1(%arg0: i32, %arg1: i32, %arg2: i32) -> (i32, i32) {
    %c0_i32 = arith.constant 0 : i32
    return %arg1, %arg2 : i32, i32
  }
  func.func @transform_2(%arg0: i32, %arg1: i32, %arg2: i32) -> (i32, i32) {
    %c0_i32 = arith.constant 0 : i32
    %c0_i32_0 = arith.constant 0 : i32
    return %arg0, %c0_i32 : i32, i32
  }
  func.func @transform_3(%arg0: i32, %arg1: i32, %arg2: i32) -> (i32, i32) {
    %c0_i32 = arith.constant 0 : i32
    %c0_i32_0 = arith.constant 0 : i32
    return %c0_i32, %arg1 : i32, i32
  }
  func.func @transform_4(%arg0: i32, %arg1: i32, %arg2: i32) -> (i32, i32) {
    %c0_i32 = arith.constant 0 : i32
    return %arg0, %arg1 : i32, i32
  }
}

</mosaic_0001>

<llo_original>
// kernel: normalized_linear.1
$region0: #{normalized_linear.1}
  #allocation0 [shape = 'u32[]', space=smem, size = 0x4, offset = 0x4, fixed_abs, tag = 'smem constant byte address 0x4 - core index']
  #allocation1 [shape = 'u32[72,128]{1,0:T(1,128)}', space=vmem, size = 0x9000, scoped, tag = 'internal scratch']
  #allocation2 [shape = 'f32[16,16]{1,0:T(8,128)}', space=vmem, size = 0x2000, scoped, tag = 'scratch operand']
  %s0 = inlined_call_operand.vmem [shape: f32[16,32], index: 0, kind: input, shape index: {}]
  %s1 = inlined_call_operand.vmem [shape: f32[16,32], index: 1, kind: input, shape index: {}]
  %s2 = inlined_call_operand.vmem [shape: f32[16,1], index: 2, kind: input, shape index: {}]
  %s3 = inlined_call_operand.vmem [shape: f32[1,16], index: 3, kind: input, shape index: {}]
  %s4 = inlined_call_operand.hbm [shape: f32[16,16], index: 4, kind: output, shape index: {}]
  %s5 = sld [smem:[#allocation0]]
  $region34: #{normalized_linear.1} parent=0
    _
  %s7 = ssub.s32 1, %s5
  %s8 = scalar_select 0, %s7, %s5
  $region1: #{normalized_linear.1} parent=0
    #allocation3 [shape = 'u8[8192]{0}', space=vmem, size = 0x2000, scoped, tag = 'output window, operand 0, single buffered']
    #allocation4 [shape = 's32[1]{0}', space=sflag, size = 0x4, scoped, tag = 'scoped memory for normalized_linear.1']
    %9 = vsyncpa [#allocation4], 0
    // Predicated region
    $region2: #{normalized_linear.1} parent=1 // pred_check
      _
    $region3: #{normalized_linear.1} parent=1 // pred_check_branch
      %11 = sbr.rel (0) target = $region5
    $region4: #{normalized_linear.1} parent=1 // pred_region
      _
    $region5: #{normalized_linear.1} parent=1 // pred_fallthru
      _
    // Predicated region
    $region6: #{normalized_linear.1} parent=1 // pred_check
      _
    $region7: #{normalized_linear.1} parent=1 // pred_check_branch
      %13 = sbr.rel (0) target = $region9
    $region8: #{normalized_linear.1} parent=1 // pred_region
      _
    $region9: #{normalized_linear.1} parent=1 // pred_fallthru
      _
    // Predicated region
    $region10: #{normalized_linear.1} parent=1 // pred_check
      _
    $region11: #{normalized_linear.1} parent=1 // pred_check_branch
      %15 = sbr.rel (0) target = $region13
    $region12: #{normalized_linear.1} parent=1 // pred_region
      _
    $region13: #{normalized_linear.1} parent=1 // pred_fallthru
      _
    // Predicated region
    $region14: #{normalized_linear.1} parent=1 // pred_check
      _
    $region15: #{normalized_linear.1} parent=1 // pred_check_branch
      %17 = sbr.rel (0) target = $region17
    $region16: #{normalized_linear.1} parent=1 // pred_region
      _
    $region17: #{normalized_linear.1} parent=1 // pred_fallthru
      _
    %p18 = scmp.eq.s32.totalorder 0, 0
    // Predicated region
    $region18: #{normalized_linear.1} parent=1 // pred_check
      %p19 = pneg %p18
    $region19: #{normalized_linear.1} parent=1 // pred_check_branch
      %21 = sbr.rel (%p19) target = $region21
    $region20: #{normalized_linear.1} parent=1 // pred_region
      %vm22 = vcmask 130048
      %23 = vst.msk [vmem:[#allocation2] sm:$0xff] %vm22, 0.0
      %24 = vst.msk [vmem:[#allocation2 + $0x8] sm:$0xff] %vm22, 0.0
    $region21: #{normalized_linear.1} parent=1 // pred_fallthru
      _
    %v25 = vld [vmem:[%s0] sm:$0xff]
    %v26 = vld [vmem:[%s0 + $0x8] sm:$0xff]
    %v27 = vld [vmem:[%s1] sm:$0xff]
    %v28 = vld [vmem:[%s1 + $0x8] sm:$0xff]
    %v29 = vld [vmem:[#allocation2] sm:$0xff]
    %v30 = vld [vmem:[#allocation2 + $0x8] sm:$0xff]
    %vm31 = vcmask 261120
    %v33 = vsel %vm31, %v25, 0
    %v36 = vsel %vm31, %v26, 0
    %v39 = vsel %vm31, %v27, 0
    %v42 = vsel %vm31, %v28, 0
    %44 = vmatpush.xpose.msra.mxu0 0.0
    %45 = vmatpush.xpose.msra.mxu0 0.0
    %46 = vmatpush.xpose.msra.mxu0 0.0
    %47 = vmatpush.xpose.msra.mxu0 0.0
    %48 = vmatpush.xpose.msra.mxu0 0.0
    %49 = vmatpush.xpose.msra.mxu0 0.0
    %50 = vmatpush.xpose.msra.mxu0 0.0
    %51 = vmatpush.xpose.msra.mxu0 0.0
    %52 = vmatpush.xpose.msra.mxu0 0.0
    %53 = vmatpush.xpose.msra.mxu0 0.0
    %54 = vmatpush.xpose.msra.mxu0 0.0
    %55 = vmatpush.xpose.msra.mxu0 0.0
    %56 = vmatpush.xpose.msra.mxu0 0.0
    %57 = vmatpush.xpose.msra.mxu0 0.0
    %58 = vmatpush.xpose.msra.mxu0 %v42
    %59 = vmatpush.xpose.msra.mxu0 %v39
    %60 = vmatmul.f32.gmra.mxu0 %v33
    %v61 = vpop.f32.mrf.mxu0
    %v62 = vadd.f32 0.0, %v61
    %63 = vmatmul.f32.gmra.mxu0 %v36
    %v64 = vpop.f32.mrf.mxu0
    %v65 = vadd.f32 0.0, %v64
    %66 = vdwg.mxu0
    %v67 = vadd.f32 %v29, %v62
    %v68 = vadd.f32 %v30, %v65
    %vm69 = vcmask 130048
    %70 = vst.msk [vmem:[#allocation2] sm:$0xff] %vm69, %v67
    %71 = vst.msk [vmem:[#allocation2 + $0x8] sm:$0xff] %vm69, %v68
    // Predicated region
    $region22: #{normalized_linear.1} parent=1 // pred_check
      %p72 = pneg %p18
    $region23: #{normalized_linear.1} parent=1 // pred_check_branch
      %74 = sbr.rel (%p72) target = $region25
    $region24: #{normalized_linear.1} parent=1 // pred_region
      %v75 = vld [vmem:[#allocation2] sm:$0xff]
      %v76 = vld [vmem:[#allocation2 + $0x8] sm:$0xff]
      %v77 = vld [vmem:[%s2] sm:$0xff]
      %v78 = vld [vmem:[%s2 + $0x8] sm:$0xff]
      %80 = vset.pattern.permute.xlu0 0
      %81 = vperm.xlu0 %80, %v77
      %v82 = vpop.permute.xlu0 %81
      %85 = vset.pattern.permute.xlu0 0
      %86 = vperm.xlu0 %85, %v78
      %v87 = vpop.permute.xlu0 %86
      %v89 = vmul.f32 %v75, %v82
      %v90 = vmul.f32 %v76, %v87
      %v91 = vld [vmem:[%s3] sm:$0x1]
      %v93 = vperm.slane %v91, 0
      %v95 = vmul.f32 %v89, %v93
      %v96 = vmul.f32 %v90, %v93
      %97 = vst.msk [vmem:[#allocation3] sm:$0xff] %vm69, %v95
      %98 = vst.msk [vmem:[#allocation3 + $0x8] sm:$0xff] %vm69, %v96
    $region25: #{normalized_linear.1} parent=1 // pred_fallthru
      _
    // Predicated region
    $region26: #{normalized_linear.1} parent=1 // pred_check
      _
    $region27: #{normalized_linear.1} parent=1 // pred_check_branch
      %100 = sbr.rel (0) target = $region29
    $region28: #{normalized_linear.1} parent=1 // pred_region
      %102 = vsyncadd [#allocation4], 0
      %s103 = sshll.u32 [#allocation3], 4
      %s104 = int_to_ptr.vmem [resolvable:$true] %s103
      %s105 = sshll.u32 %s4, 4
      %s106 = int_to_ptr.hbm [resolvable:$true] %s105
      %111 = dma.vmem_to_hbm [thread:$0]  %s104, 256, %s106, [#allocation4], 128, 128, 8
    $region29: #{normalized_linear.1} parent=1 // pred_fallthru
      _
    // Predicated region
    $region30: #{normalized_linear.1} parent=1 // pred_check
      _
    $region31: #{normalized_linear.1} parent=1 // pred_check_branch
      %113 = sbr.rel (0) target = $region33
    $region32: #{normalized_linear.1} parent=1 // pred_region
      %115 = dma.done [#allocation4], 256
    $region33: #{normalized_linear.1} parent=1 // pred_fallthru
      _
    %116 = vsyncpa [#allocation4], 1

</llo_original>
